<compile_context>
chip_gen: v6e
topology: v6e:2x2x1
jax: 0.10.0
libtpu: 0.0.40
codegen_flags: <defaults>
</compile_context>

<pallas_src>
import jax
import jax.numpy as jnp
from jax.experimental import pallas as pl
from jax.experimental.pallas import tpu as pltpu


def _round_up(x, m):
    return ((x + m - 1) // m) * m


def _make_fused_mlp_kernel(n_layers, out_features):
    """Fused (Linear -> ReLU) x n_layers kernel.

    Refs: x, (w0, b0), (w1, b1), ..., out.
    Hidden dims are lane-padded to 128 (weights only, in VMEM); activations
    never leave vregs/VMEM; only the real output columns are stored to HBM.
    """

    def kernel(x_ref, *rest):
        o_ref = rest[-1]
        wb = rest[:-1]
        h = x_ref[...]                                   # bf16 (TM, K)
        for l in range(n_layers):
            w = wb[2 * l][...]                           # bf16 (din_p, dout_p)
            b = wb[2 * l + 1][...].astype(jnp.float32)   # (1, dout_p), f32 add
            acc = jnp.dot(h, w, preferred_element_type=jnp.float32)  # bf16 MXU, f32 acc
            hf = jnp.maximum(acc + b, 0.0)               # f32 epilogue (v5e-safe)
            # keep MXU inputs bf16; intermediates stay on-chip
            h = hf.astype(jnp.bfloat16) if l + 1 < n_layers else hf
        # store only the real output columns (lane padding never reaches HBM)
        o_ref[...] = h[:, :out_features].astype(o_ref.dtype)

    return kernel


@jax.jit
def value_block_forward(state, params):
    """Pallas forward: state -> relu(Linear(state)) per block, fully fused."""
    M, K = state.shape
    n_layers = len(params)
    out_features = params[-1][0].shape[1]

    # Per-layer feature dims: layer-l input / (lane-padded) output.
    dims = [K] + [w.shape[1] for w, _ in params]
    dims_out_p = [_round_up(d, 128) for d in dims[1:]]   # hidden/out lanes in VMEM
    dims_in_p = [K] + dims_out_p[:-1]                    # layer-0 input stays unpadded

    # Batch tile: large tiles amortize the ~0.35us/step overhead; keep >=2 grid
    # steps when M is big enough so both v7x TensorCores get work.
    if M >= 2048:
        TM = 1024
    elif M >= 512:
        TM = _round_up((M + 1) // 2, 8)
    else:
        TM = _round_up(max(M, 8), 8)
    grid = pl.cdiv(M, TM)        # ragged last tile: no row-padded copy of x

    io_dtype = jnp.bfloat16      # halve HBM bytes for x and weights

    x_in = state.astype(io_dtype)
    padded_wb = []
    for l, (w, b) in enumerate(params):
        din, dout = w.shape
        dinp, doutp = dims_in_p[l], dims_out_p[l]
        w_p = jnp.zeros((dinp, doutp), io_dtype).at[:din, :dout].set(w.astype(io_dtype))
        b_p = jnp.zeros((1, doutp), io_dtype).at[:, :dout].set(
            b.reshape(1, dout).astype(io_dtype))
        padded_wb += [w_p, b_p]

    # BlockSpecs: x/out tile over batch; weights/biases use a constant index_map
    # so they stay VMEM-resident across batch tiles (never re-DMA'd).
    in_specs = [pl.BlockSpec((TM, K), lambda i: (i, 0))]
    for l in range(n_layers):
        dinp, doutp = dims_in_p[l], dims_out_p[l]
        in_specs.append(pl.BlockSpec((dinp, doutp), lambda i: (0, 0)))
        in_specs.append(pl.BlockSpec((1, doutp), lambda i: (0, 0)))
    out_spec = pl.BlockSpec((TM, out_features), lambda i: (i, 0))

    flops = 2 * M * sum(dims_in_p[l] * dims_out_p[l] for l in range(n_layers))
    bytes_accessed = (
        2 * M * K                                                    # bf16 x
        + 2 * sum(dims_in_p[l] * dims_out_p[l] + dims_out_p[l]
                  for l in range(n_layers))                          # bf16 W, b
        + state.dtype.itemsize * M * out_features                    # output
    )

    return pl.pallas_call(
        _make_fused_mlp_kernel(n_layers, out_features),
        out_shape=jax.ShapeDtypeStruct((M, out_features), state.dtype),
        grid=(grid,),
        in_specs=in_specs,
        out_specs=out_spec,
        compiler_params=pltpu.CompilerParams(
            dimension_semantics=("parallel",),
        ),
        cost_estimate=pl.CostEstimate(
            flops=flops, transcendentals=0, bytes_accessed=bytes_accessed
        ),
    )(x_in, *padded_wb)


def init_value_block_params(key, dims):
    """Deterministic synthetic parameters for the stack of Linear blocks.

    dims = [in_dim, h1, ..., out_dim] -> list of (W:(in,out), b:(1,out)).
    """
    params = []
    for l, (din, dout) in enumerate(zip(dims[:-1], dims[1:])):
        kw, kb, key = jax.random.split(jax.random.fold_in(key, l), 3)
        scale = 1.0 / jnp.sqrt(jnp.float32(din))
        w = jax.random.uniform(kw, (din, dout), jnp.float32, -scale, scale)
        b = jax.random.uniform(kb, (1, dout), jnp.float32, -scale, scale)
        params.append((w, b))
    return params


def value_block_forward_ref(state, params):
    """Pure-JAX reference mirroring the kernel's bf16-in / f32-accumulate path."""
    n = len(params)
    h = state.astype(jnp.bfloat16).astype(jnp.float32)
    for l, (w, b) in enumerate(params):
        w32 = w.astype(jnp.bfloat16).astype(jnp.float32)
        b32 = b.reshape(1, -1).astype(jnp.bfloat16).astype(jnp.float32)
        h = jnp.maximum(h @ w32 + b32, 0.0)
        if l + 1 < n:
            h = h.astype(jnp.bfloat16).astype(jnp.float32)
    return h


if __name__ == "__main__":
    key = jax.random.PRNGKey(0)
    k_x, k_p = jax.random.split(key)

    batch, in_dim = 8, 32
    dims = [in_dim, 64, 64, 1]  # typical value-head MLP: 32 -> 64 -> 64 -> 1

    state = jax.random.normal(k_x, (batch, in_dim), jnp.float32)
    params = init_value_block_params(k_p, dims)

    out = value_block_forward(state, params)
    out = jax.block_until_ready(out)

    ref = value_block_forward_ref(state, params)
    assert out.shape == (batch, dims[-1])
    assert jnp.allclose(out, ref, atol=1e-4, rtol=1e-4)

    print("KERNEL_OK")
</pallas_src>

<mosaic_0001>
module attributes {stable_mosaic.version = 11 : i64} {
  func.func @kernel(%arg0: i32, %arg1: memref<8x32xbf16, #tpu.memory_space<vmem>>, %arg2: memref<32x128xbf16, #tpu.memory_space<vmem>>, %arg3: memref<1x128xbf16, #tpu.memory_space<vmem>>, %arg4: memref<128x128xbf16, #tpu.memory_space<vmem>>, %arg5: memref<1x128xbf16, #tpu.memory_space<vmem>>, %arg6: memref<128x128xbf16, #tpu.memory_space<vmem>>, %arg7: memref<1x128xbf16, #tpu.memory_space<vmem>>, %arg8: memref<8x1xf32, #tpu.memory_space<vmem>>) attributes {dimension_semantics = [#tpu.dimension_semantics<parallel>], iteration_bounds = array<i64: 1>, scalar_prefetch = 0 : i64, scratch_operands = 0 : i64, tpu.core_type = #tpu.core_type<tc>, window_params = [{transform_indices = @transform_0, window_bounds = array<i64: 8, 32>}, {pipeline_mode = #tpu.pipeline_mode<synchronous>, transform_indices = @transform_1, window_bounds = array<i64: 32, 128>}, {pipeline_mode = #tpu.pipeline_mode<synchronous>, transform_indices = @transform_2, window_bounds = array<i64: 1, 128>}, {pipeline_mode = #tpu.pipeline_mode<synchronous>, transform_indices = @transform_3, window_bounds = array<i64: 128, 128>}, {pipeline_mode = #tpu.pipeline_mode<synchronous>, transform_indices = @transform_4, window_bounds = array<i64: 1, 128>}, {pipeline_mode = #tpu.pipeline_mode<synchronous>, transform_indices = @transform_5, window_bounds = array<i64: 128, 128>}, {pipeline_mode = #tpu.pipeline_mode<synchronous>, transform_indices = @transform_6, window_bounds = array<i64: 1, 128>}, {transform_indices = @transform_7, window_bounds = array<i64: 8, 1>}]} {
    %c0 = arith.constant 0 : index
    %c0_0 = arith.constant 0 : index
    %0 = vector.load %arg1[%c0, %c0_0] : memref<8x32xbf16, #tpu.memory_space<vmem>>, vector<8x32xbf16>
    %c0_1 = arith.constant 0 : index
    %c0_2 = arith.constant 0 : index
    %1 = vector.load %arg2[%c0_1, %c0_2] : memref<32x128xbf16, #tpu.memory_space<vmem>>, vector<32x128xbf16>
    %c0_3 = arith.constant 0 : index
    %c0_4 = arith.constant 0 : index
    %2 = vector.load %arg3[%c0_3, %c0_4] : memref<1x128xbf16, #tpu.memory_space<vmem>>, vector<1x128xbf16>
    %3 = arith.extf %2 : vector<1x128xbf16> to vector<1x128xf32>
    %cst = arith.constant dense<0.000000e+00> : vector<8x128xf32>
    %4 = tpu.matmul %0, %1, %cst {dimension_numbers = #tpu.dot_dimension_numbers<[1], [0], [0], [1], [0, 0, 1, 1], [], []>} : vector<8x32xbf16>, vector<32x128xbf16>, vector<8x128xf32> -> vector<8x128xf32>
    %5 = vector.broadcast %3 : vector<1x128xf32> to vector<8x128xf32>
    %6 = arith.addf %4, %5 : vector<8x128xf32>
    %cst_5 = arith.constant 0.000000e+00 : f32
    %7 = vector.broadcast %cst_5 : f32 to vector<8x128xf32>
    %8 = arith.maximumf %6, %7 : vector<8x128xf32>
    %9 = arith.truncf %8 : vector<8x128xf32> to vector<8x128xbf16>
    %c0_6 = arith.constant 0 : index
    %c0_7 = arith.constant 0 : index
    %10 = vector.load %arg4[%c0_6, %c0_7] : memref<128x128xbf16, #tpu.memory_space<vmem>>, vector<128x128xbf16>
    %c0_8 = arith.constant 0 : index
    %c0_9 = arith.constant 0 : index
    %11 = vector.load %arg5[%c0_8, %c0_9] : memref<1x128xbf16, #tpu.memory_space<vmem>>, vector<1x128xbf16>
    %12 = arith.extf %11 : vector<1x128xbf16> to vector<1x128xf32>
    %cst_10 = arith.constant dense<0.000000e+00> : vector<8x128xf32>
    %13 = tpu.matmul %9, %10, %cst_10 {dimension_numbers = #tpu.dot_dimension_numbers<[1], [0], [0], [1], [0, 0, 1, 1], [], []>} : vector<8x128xbf16>, vector<128x128xbf16>, vector<8x128xf32> -> vector<8x128xf32>
    %14 = vector.broadcast %12 : vector<1x128xf32> to vector<8x128xf32>
    %15 = arith.addf %13, %14 : vector<8x128xf32>
    %cst_11 = arith.constant 0.000000e+00 : f32
    %16 = vector.broadcast %cst_11 : f32 to vector<8x128xf32>
    %17 = arith.maximumf %15, %16 : vector<8x128xf32>
    %18 = arith.truncf %17 : vector<8x128xf32> to vector<8x128xbf16>
    %c0_12 = arith.constant 0 : index
    %c0_13 = arith.constant 0 : index
    %19 = vector.load %arg6[%c0_12, %c0_13] : memref<128x128xbf16, #tpu.memory_space<vmem>>, vector<128x128xbf16>
    %c0_14 = arith.constant 0 : index
    %c0_15 = arith.constant 0 : index
    %20 = vector.load %arg7[%c0_14, %c0_15] : memref<1x128xbf16, #tpu.memory_space<vmem>>, vector<1x128xbf16>
    %21 = arith.extf %20 : vector<1x128xbf16> to vector<1x128xf32>
    %cst_16 = arith.constant dense<0.000000e+00> : vector<8x128xf32>
    %22 = tpu.matmul %18, %19, %cst_16 {dimension_numbers = #tpu.dot_dimension_numbers<[1], [0], [0], [1], [0, 0, 1, 1], [], []>} : vector<8x128xbf16>, vector<128x128xbf16>, vector<8x128xf32> -> vector<8x128xf32>
    %23 = vector.broadcast %21 : vector<1x128xf32> to vector<8x128xf32>
    %24 = arith.addf %22, %23 : vector<8x128xf32>
    %cst_17 = arith.constant 0.000000e+00 : f32
    %25 = vector.broadcast %cst_17 : f32 to vector<8x128xf32>
    %26 = arith.maximumf %24, %25 : vector<8x128xf32>
    %27 = vector.extract_strided_slice %26 {offsets = [0, 0], sizes = [8, 1], strides = [1, 1]} : vector<8x128xf32> to vector<8x1xf32>
    %c0_18 = arith.constant 0 : index
    %c0_19 = arith.constant 0 : index
    %28 = vector.load %arg8[%c0_18, %c0_19] : memref<8x1xf32, #tpu.memory_space<vmem>>, vector<8x1xf32>
    tpu.vector_store %arg8[%c0_18, %c0_19], %27 {strides = array<i32>} : memref<8x1xf32, #tpu.memory_space<vmem>>, vector<8x1xf32>,
    return
  }
  func.func @transform_0(%arg0: i32) -> (i32, i32) {
    %c0_i32 = arith.constant 0 : i32
    %c0_i32_0 = arith.constant 0 : i32
    return %arg0, %c0_i32 : i32, i32
  }
  func.func @transform_1(%arg0: i32) -> (i32, i32) {
    %c0_i32 = arith.constant 0 : i32
    %c0_i32_0 = arith.constant 0 : i32
    %c0_i32_1 = arith.constant 0 : i32
    return %c0_i32, %c0_i32_0 : i32, i32
  }
  func.func @transform_2(%arg0: i32) -> (i32, i32) {
    %c0_i32 = arith.constant 0 : i32
    %c0_i32_0 = arith.constant 0 : i32
    %c0_i32_1 = arith.constant 0 : i32
    return %c0_i32, %c0_i32_0 : i32, i32
  }
  func.func @transform_3(%arg0: i32) -> (i32, i32) {
    %c0_i32 = arith.constant 0 : i32
    %c0_i32_0 = arith.constant 0 : i32
    %c0_i32_1 = arith.constant 0 : i32
    return %c0_i32, %c0_i32_0 : i32, i32
  }
  func.func @transform_4(%arg0: i32) -> (i32, i32) {
    %c0_i32 = arith.constant 0 : i32
    %c0_i32_0 = arith.constant 0 : i32
    %c0_i32_1 = arith.constant 0 : i32
    return %c0_i32, %c0_i32_0 : i32, i32
  }
  func.func @transform_5(%arg0: i32) -> (i32, i32) {
    %c0_i32 = arith.constant 0 : i32
    %c0_i32_0 = arith.constant 0 : i32
    %c0_i32_1 = arith.constant 0 : i32
    return %c0_i32, %c0_i32_0 : i32, i32
  }
  func.func @transform_6(%arg0: i32) -> (i32, i32) {
    %c0_i32 = arith.constant 0 : i32
    %c0_i32_0 = arith.constant 0 : i32
    %c0_i32_1 = arith.constant 0 : i32
    return %c0_i32, %c0_i32_0 : i32, i32
  }
  func.func @transform_7(%arg0: i32) -> (i32, i32) {
    %c0_i32 = arith.constant 0 : i32
    %c0_i32_0 = arith.constant 0 : i32
    return %arg0, %c0_i32 : i32, i32
  }
}

</mosaic_0001>

<llo_original>
// kernel: value_block_forward.1
$region0: #{value_block_forward.1}
  #allocation0 [shape = 'u32[]', space=smem, size = 0x4, offset = 0x4, fixed_abs, tag = 'smem constant byte address 0x4 - core index']
  #allocation1 [shape = 'u32[144,128]{1,0:T(1,128)}', space=vmem, size = 0x12000, scoped, tag = 'internal scratch']
  %s0 = inlined_call_operand.vmem [shape: bf16[8,32], index: 0, kind: input, shape index: {}]
  %s1 = inlined_call_operand.vmem [shape: bf16[32,128], index: 1, kind: input, shape index: {}]
  %s2 = inlined_call_operand.vmem [shape: bf16[1,128], index: 2, kind: input, shape index: {}]
  %s3 = inlined_call_operand.vmem [shape: bf16[128,128], index: 3, kind: input, shape index: {}]
  %s4 = inlined_call_operand.vmem [shape: bf16[1,128], index: 4, kind: input, shape index: {}]
  %s5 = inlined_call_operand.vmem [shape: bf16[128,128], index: 5, kind: input, shape index: {}]
  %s6 = inlined_call_operand.vmem [shape: bf16[1,128], index: 6, kind: input, shape index: {}]
  %s7 = inlined_call_operand.vmem [shape: f32[8,1], index: 7, kind: output, shape index: {}]
  %s8 = sld [smem:[#allocation0]]
  $region38: #{value_block_forward.1} parent=0
    _
  %s10 = ssub.s32 1, %s8
  %s11 = scalar_select 0, %s10, %s8
  // Predicated region
  $region2: #{value_block_forward.1} parent=0 // pred_check
    _
  $region3: #{value_block_forward.1} parent=0 // pred_check_branch
    %13 = sbr.rel (0) target = $region5
  $region4: #{value_block_forward.1} parent=0 // pred_region
    _
  $region5: #{value_block_forward.1} parent=0 // pred_fallthru
    _
  // Predicated region
  $region6: #{value_block_forward.1} parent=0 // pred_check
    _
  $region7: #{value_block_forward.1} parent=0 // pred_check_branch
    %15 = sbr.rel (0) target = $region9
  $region8: #{value_block_forward.1} parent=0 // pred_region
    _
  $region9: #{value_block_forward.1} parent=0 // pred_fallthru
    _
  // Predicated region
  $region10: #{value_block_forward.1} parent=0 // pred_check
    _
  $region11: #{value_block_forward.1} parent=0 // pred_check_branch
    %17 = sbr.rel (0) target = $region13
  $region12: #{value_block_forward.1} parent=0 // pred_region
    _
  $region13: #{value_block_forward.1} parent=0 // pred_fallthru
    _
  // Predicated region
  $region14: #{value_block_forward.1} parent=0 // pred_check
    _
  $region15: #{value_block_forward.1} parent=0 // pred_check_branch
    %19 = sbr.rel (0) target = $region17
  $region16: #{value_block_forward.1} parent=0 // pred_region
    _
  $region17: #{value_block_forward.1} parent=0 // pred_fallthru
    _
  // Predicated region
  $region18: #{value_block_forward.1} parent=0 // pred_check
    _
  $region19: #{value_block_forward.1} parent=0 // pred_check_branch
    %21 = sbr.rel (0) target = $region21
  $region20: #{value_block_forward.1} parent=0 // pred_region
    _
  $region21: #{value_block_forward.1} parent=0 // pred_fallthru
    _
  // Predicated region
  $region22: #{value_block_forward.1} parent=0 // pred_check
    _
  $region23: #{value_block_forward.1} parent=0 // pred_check_branch
    %23 = sbr.rel (0) target = $region25
  $region24: #{value_block_forward.1} parent=0 // pred_region
    _
  $region25: #{value_block_forward.1} parent=0 // pred_fallthru
    _
  // Predicated region
  $region26: #{value_block_forward.1} parent=0 // pred_check
    _
  $region27: #{value_block_forward.1} parent=0 // pred_check_branch
    %25 = sbr.rel (0) target = $region29
  $region28: #{value_block_forward.1} parent=0 // pred_region
    _
  $region29: #{value_block_forward.1} parent=0 // pred_fallthru
    _
  %v27 = vld [vmem:[%s0] sm:$0xf]
  %v28 = vld [vmem:[%s1] sm:$0xf]
  %v29 = vld [vmem:[%s1 + $0x4] sm:$0xf]
  %v30 = vld [vmem:[%s1 + $0x8] sm:$0xf]
  %v31 = vld [vmem:[%s1 + $0xc] sm:$0xf]
  %v32 = vld [vmem:[%s2] sm:$0x1]
  %v33 = vunpack.c.l.bf16 %v32
  %v34 = vlaneseq
  %v35 = vshrl.u32 %v34, 7
  %v36 = vsub.s32 0, %v35
  %v37 = vrot.slane %v33, %v36
  %v42 = vunpack.c.l.b16 %v28
  %v43 = vunpack.c.l.b16 %v29
  %v44 = vunpack.c.l.b16 %v30
  %v45 = vunpack.c.l.b16 %v31
  %v46 = vpack.c.b16 %v43, %v42
  %v47 = vpack.c.b16 %v45, %v44
  %vm50 = vcmask 261120
  %v52 = vsel %vm50, %v27, 0
  %54 = vmatprep.subr.bf16.mxu0 0
  %55 = vmatpush1.bf16.msra.mxu0 0
  %56 = vmatprep.subr.bf16.mxu0 0
  %57 = vmatpush1.bf16.msra.mxu0 0
  %58 = vmatprep.subr.bf16.mxu0 0
  %59 = vmatpush1.bf16.msra.mxu0 0
  %60 = vmatprep.subr.bf16.mxu0 0
  %61 = vmatpush1.bf16.msra.mxu0 0
  %62 = vmatprep.subr.bf16.mxu0 0
  %63 = vmatpush1.bf16.msra.mxu0 0
  %64 = vmatprep.subr.bf16.mxu0 0
  %65 = vmatpush1.bf16.msra.mxu0 0
  %66 = vmatprep.subr.bf16.mxu0 0
  %67 = vmatpush1.bf16.msra.mxu0 %v47
  %68 = vmatprep.subr.bf16.mxu0 0
  %69 = vmatpush1.bf16.msra.mxu0 %v46
  %70 = vmatprep.subr.bf16.mxu0 0
  %71 = vmatpush2.bf16.msra.mxu0 0
  %72 = vmatprep.subr.bf16.mxu0 0
  %73 = vmatpush2.bf16.msra.mxu0 0
  %74 = vmatprep.subr.bf16.mxu0 0
  %75 = vmatpush2.bf16.msra.mxu0 0
  %76 = vmatprep.subr.bf16.mxu0 0
  %77 = vmatpush2.bf16.msra.mxu0 0
  %78 = vmatprep.subr.bf16.mxu0 0
  %79 = vmatpush2.bf16.msra.mxu0 0
  %80 = vmatprep.subr.bf16.mxu0 0
  %81 = vmatpush2.bf16.msra.mxu0 0
  %82 = vmatprep.subr.bf16.mxu0 0
  %83 = vmatpush2.bf16.msra.mxu0 0
  %84 = vmatprep.subr.bf16.mxu0 0
  %85 = vmatpush2.bf16.msra.mxu0 0
  %86 = vmatprep.mubr.bf16.mxu0 0
  %87 = vmatmul.mubr.bf16.gmra.mxu0 %v52
  %v88 = vpop.f32.mrf.mxu0
  %v89 = vadd.f32 %v37, %v88
  %v90 = vpop.f32.mrf.mxu0
  %v91 = vpop.f32.mrf.mxu0
  %v92 = vpop.f32.mrf.mxu0
  %93 = vdwg.mxu0
  %v94 = vmax.f32 %v89, 0.0
  %v95 = vpack.c.bf16 %v94, %v94
  %v96 = vld [vmem:[%s3] sm:$0xf]
  %v97 = vld [vmem:[%s3 + $0x4] sm:$0xf]
  %v98 = vld [vmem:[%s3 + $0x8] sm:$0xf]
  %v99 = vld [vmem:[%s3 + $0xc] sm:$0xf]
  %v100 = vld [vmem:[%s3 + $0x10] sm:$0xf]
  %v101 = vld [vmem:[%s3 + $0x14] sm:$0xf]
  %v102 = vld [vmem:[%s3 + $0x18] sm:$0xf]
  %v103 = vld [vmem:[%s3 + $0x1c] sm:$0xf]
  %v104 = vld [vmem:[%s3 + $0x20] sm:$0xf]
  %v105 = vld [vmem:[%s3 + $0x24] sm:$0xf]
  %v106 = vld [vmem:[%s3 + $0x28] sm:$0xf]
  %v107 = vld [vmem:[%s3 + $0x2c] sm:$0xf]
  %v108 = vld [vmem:[%s3 + $0x30] sm:$0xf]
  %v109 = vld [vmem:[%s3 + $0x34] sm:$0xf]
  %v110 = vld [vmem:[%s3 + $0x38] sm:$0xf]
  %v111 = vld [vmem:[%s3 + $0x3c] sm:$0xf]
  %v112 = vld [vmem:[%s4] sm:$0x1]
  %v113 = vunpack.c.l.bf16 %v112
  %v114 = vlaneseq
  %v115 = vshrl.u32 %v114, 7
  %v116 = vsub.s32 0, %v115
  %v117 = vrot.slane %v113, %v116
  %v134 = vunpack.c.l.b16 %v96
  %v135 = vunpack.c.l.b16 %v97
  %v136 = vunpack.c.l.b16 %v98
  %v137 = vunpack.c.l.b16 %v99
  %v138 = vunpack.c.l.b16 %v100
  %v139 = vunpack.c.l.b16 %v101
  %v140 = vunpack.c.l.b16 %v102
  %v141 = vunpack.c.l.b16 %v103
  %v142 = vunpack.c.l.b16 %v104
  %v143 = vunpack.c.l.b16 %v105
  %v144 = vunpack.c.l.b16 %v106
  %v145 = vunpack.c.l.b16 %v107
  %v146 = vunpack.c.l.b16 %v108
  %v147 = vunpack.c.l.b16 %v109
  %v148 = vunpack.c.l.b16 %v110
  %v149 = vunpack.c.l.b16 %v111
  %v150 = vpack.c.b16 %v135, %v134
  %v151 = vpack.c.b16 %v137, %v136
  %v152 = vpack.c.b16 %v139, %v138
  %v153 = vpack.c.b16 %v141, %v140
  %v154 = vpack.c.b16 %v143, %v142
  %v155 = vpack.c.b16 %v145, %v144
  %v156 = vpack.c.b16 %v147, %v146
  %v157 = vpack.c.b16 %v149, %v148
  %166 = vmatprep.subr.bf16.mxu0 0
  %167 = vmatpush1.bf16.msra.mxu0 %v157
  %168 = vmatprep.subr.bf16.mxu0 0
  %169 = vmatpush1.bf16.msra.mxu0 %v156
  %170 = vmatprep.subr.bf16.mxu0 0
  %171 = vmatpush1.bf16.msra.mxu0 %v155
  %172 = vmatprep.subr.bf16.mxu0 0
  %173 = vmatpush1.bf16.msra.mxu0 %v154
  %174 = vmatprep.subr.bf16.mxu0 0
  %175 = vmatpush1.bf16.msra.mxu0 %v153
  %176 = vmatprep.subr.bf16.mxu0 0
  %177 = vmatpush1.bf16.msra.mxu0 %v152
  %178 = vmatprep.subr.bf16.mxu0 0
  %179 = vmatpush1.bf16.msra.mxu0 %v151
  %180 = vmatprep.subr.bf16.mxu0 0
  %181 = vmatpush1.bf16.msra.mxu0 %v150
  %182 = vmatprep.subr.bf16.mxu0 0
  %183 = vmatpush2.bf16.msra.mxu0 0
  %184 = vmatprep.subr.bf16.mxu0 0
  %185 = vmatpush2.bf16.msra.mxu0 0
  %186 = vmatprep.subr.bf16.mxu0 0
  %187 = vmatpush2.bf16.msra.mxu0 0
  %188 = vmatprep.subr.bf16.mxu0 0
  %189 = vmatpush2.bf16.msra.mxu0 0
  %190 = vmatprep.subr.bf16.mxu0 0
  %191 = vmatpush2.bf16.msra.mxu0 0
  %192 = vmatprep.subr.bf16.mxu0 0
  %193 = vmatpush2.bf16.msra.mxu0 0
  %194 = vmatprep.subr.bf16.mxu0 0
  %195 = vmatpush2.bf16.msra.mxu0 0
  %196 = vmatprep.subr.bf16.mxu0 0
  %197 = vmatpush2.bf16.msra.mxu0 0
  %198 = vmatprep.mubr.bf16.mxu0 0
  %199 = vmatmul.mubr.bf16.gmra.mxu0 %v95
  %v200 = vpop.f32.mrf.mxu0
  %v201 = vadd.f32 %v117, %v200
  %v202 = vpop.f32.mrf.mxu0
  %v203 = vpop.f32.mrf.mxu0
  %v204 = vpop.f32.mrf.mxu0
  %205 = vdwg.mxu0
  %v206 = vmax.f32 %v201, 0.0
  %v207 = vpack.c.bf16 %v206, %v206
  %v208 = vld [vmem:[%s5] sm:$0xf]
  %v209 = vld [vmem:[%s5 + $0x4] sm:$0xf]
  %v210 = vld [vmem:[%s5 + $0x8] sm:$0xf]
  %v211 = vld [vmem:[%s5 + $0xc] sm:$0xf]
  %v212 = vld [vmem:[%s5 + $0x10] sm:$0xf]
  %v213 = vld [vmem:[%s5 + $0x14] sm:$0xf]
  %v214 = vld [vmem:[%s5 + $0x18] sm:$0xf]
  %v215 = vld [vmem:[%s5 + $0x1c] sm:$0xf]
  %v216 = vld [vmem:[%s5 + $0x20] sm:$0xf]
  %v217 = vld [vmem:[%s5 + $0x24] sm:$0xf]
  %v218 = vld [vmem:[%s5 + $0x28] sm:$0xf]
  %v219 = vld [vmem:[%s5 + $0x2c] sm:$0xf]
  %v220 = vld [vmem:[%s5 + $0x30] sm:$0xf]
  %v221 = vld [vmem:[%s5 + $0x34] sm:$0xf]
  %v222 = vld [vmem:[%s5 + $0x38] sm:$0xf]
  %v223 = vld [vmem:[%s5 + $0x3c] sm:$0xf]
  %v224 = vld [vmem:[%s6] sm:$0x1]
  %v225 = vunpack.c.l.bf16 %v224
  %v226 = vlaneseq
  %v227 = vshrl.u32 %v226, 7
  %v228 = vsub.s32 0, %v227
  %v229 = vrot.slane %v225, %v228
  %v246 = vunpack.c.l.b16 %v208
  %v247 = vunpack.c.l.b16 %v209
  %v248 = vunpack.c.l.b16 %v210
  %v249 = vunpack.c.l.b16 %v211
  %v250 = vunpack.c.l.b16 %v212
  %v251 = vunpack.c.l.b16 %v213
  %v252 = vunpack.c.l.b16 %v214
  %v253 = vunpack.c.l.b16 %v215
  %v254 = vunpack.c.l.b16 %v216
  %v255 = vunpack.c.l.b16 %v217
  %v256 = vunpack.c.l.b16 %v218
  %v257 = vunpack.c.l.b16 %v219
  %v258 = vunpack.c.l.b16 %v220
  %v259 = vunpack.c.l.b16 %v221
  %v260 = vunpack.c.l.b16 %v222
  %v261 = vunpack.c.l.b16 %v223
  %v262 = vpack.c.b16 %v247, %v246
  %v263 = vpack.c.b16 %v249, %v248
  %v264 = vpack.c.b16 %v251, %v250
  %v265 = vpack.c.b16 %v253, %v252
  %v266 = vpack.c.b16 %v255, %v254
  %v267 = vpack.c.b16 %v257, %v256
  %v268 = vpack.c.b16 %v259, %v258
  %v269 = vpack.c.b16 %v261, %v260
  %278 = vmatprep.subr.bf16.mxu0 0
  %279 = vmatpush1.bf16.msra.mxu0 %v269
  %280 = vmatprep.subr.bf16.mxu0 0
  %281 = vmatpush1.bf16.msra.mxu0 %v268
  %282 = vmatprep.subr.bf16.mxu0 0
  %283 = vmatpush1.bf16.msra.mxu0 %v267
  %284 = vmatprep.subr.bf16.mxu0 0
  %285 = vmatpush1.bf16.msra.mxu0 %v266
  %286 = vmatprep.subr.bf16.mxu0 0
  %287 = vmatpush1.bf16.msra.mxu0 %v265
  %288 = vmatprep.subr.bf16.mxu0 0
  %289 = vmatpush1.bf16.msra.mxu0 %v264
  %290 = vmatprep.subr.bf16.mxu0 0
  %291 = vmatpush1.bf16.msra.mxu0 %v263
  %292 = vmatprep.subr.bf16.mxu0 0
  %293 = vmatpush1.bf16.msra.mxu0 %v262
  %294 = vmatprep.subr.bf16.mxu0 0
  %295 = vmatpush2.bf16.msra.mxu0 0
  %296 = vmatprep.subr.bf16.mxu0 0
  %297 = vmatpush2.bf16.msra.mxu0 0
  %298 = vmatprep.subr.bf16.mxu0 0
  %299 = vmatpush2.bf16.msra.mxu0 0
  %300 = vmatprep.subr.bf16.mxu0 0
  %301 = vmatpush2.bf16.msra.mxu0 0
  %302 = vmatprep.subr.bf16.mxu0 0
  %303 = vmatpush2.bf16.msra.mxu0 0
  %304 = vmatprep.subr.bf16.mxu0 0
  %305 = vmatpush2.bf16.msra.mxu0 0
  %306 = vmatprep.subr.bf16.mxu0 0
  %307 = vmatpush2.bf16.msra.mxu0 0
  %308 = vmatprep.subr.bf16.mxu0 0
  %309 = vmatpush2.bf16.msra.mxu0 0
  %310 = vmatprep.mubr.bf16.mxu0 0
  %311 = vmatmul.mubr.bf16.gmra.mxu0 %v207
  %v312 = vpop.f32.mrf.mxu0
  %v313 = vadd.f32 %v229, %v312
  %v314 = vpop.f32.mrf.mxu0
  %v315 = vpop.f32.mrf.mxu0
  %v316 = vpop.f32.mrf.mxu0
  %317 = vdwg.mxu0
  %v318 = vmax.f32 %v313, 0.0
  %vm319 = vcmask 7168
  %320 = vst.msk [vmem:[%s7] sm:$0xff] %vm319, %v318
  // Predicated region
  $region30: #{value_block_forward.1} parent=0 // pred_check
    _
  $region31: #{value_block_forward.1} parent=0 // pred_check_branch
    %322 = sbr.rel (0) target = $region33
  $region32: #{value_block_forward.1} parent=0 // pred_region
    _
  $region33: #{value_block_forward.1} parent=0 // pred_fallthru
    _
  // Predicated region
  $region34: #{value_block_forward.1} parent=0 // pred_check
    _
  $region35: #{value_block_forward.1} parent=0 // pred_check_branch
    %324 = sbr.rel (0) target = $region37
  $region36: #{value_block_forward.1} parent=0 // pred_region
    _
  $region37: #{value_block_forward.1} parent=0 // pred_fallthru
    _

</llo_original>
